<compile_context>
chip_gen: v7x
topology: tpu7x:2x2x1
jax: 0.10.0
libtpu: 0.0.40
codegen_flags: <defaults>
</compile_context>

<pallas_src>
import functools

import jax
import jax.numpy as jnp
from jax import lax
from jax.experimental import pallas as pl
from jax.experimental.pallas import tpu as pltpu


def _round_up(x, m):
    return ((x + m - 1) // m) * m


# ----------------------------- Pallas kernel ---------------------------------


def _conv1d_kernel(x_ref, w_ref, b_ref, o_ref, xpad_ref, *,
                   kernel, stride, dilation, pad, t_in, t_tile):
    """One (batch, time-tile) grid step of the Conv1d.

    x_ref:    (1, T, C_in)        un-padded input for this batch element (revisited
                                  across time tiles -> DMA'd once per batch element)
    w_ref:    (K*C_in, C_out)     flattened conv weight (tap-major on the contraction)
    b_ref:    (1, C_out)          bias (zeros if bias disabled)
    o_ref:    (1, T_TILE, C_out)  output tile
    xpad_ref: (T_SC, C_in) VMEM   zero-padded copy of x, built once per batch element
    """
    ti = pl.program_id(1)
    c_in = x_ref.shape[2]
    t_sc = xpad_ref.shape[0]

    # --- once per batch element: build the halo-padded input in VMEM ----------
    @pl.when(ti == 0)
    def _():
        tail = t_sc - pad - t_in
        if pad > 0:                                   # leading conv padding
            xpad_ref[0:pad, :] = jnp.zeros((pad, c_in), xpad_ref.dtype)
        if tail > 0:                                  # trailing padding + tile slack
            xpad_ref[pad + t_in:t_sc, :] = jnp.zeros((tail, c_in), xpad_ref.dtype)
        xpad_ref[pad:pad + t_in, :] = x_ref[0].astype(xpad_ref.dtype)

    # --- im2col slab for this tile: (T_TILE, K*C_in) ---------------------------
    base = ti * (t_tile * stride)                     # t_tile*stride is a multiple of 8
    base = pl.multiple_of(base, 8)
    cols = []
    for k in range(kernel):                           # static unroll over taps
        start = base + k * dilation
        if stride == 1:
            cols.append(xpad_ref[pl.ds(start, t_tile), :])
        else:
            cols.append(xpad_ref[pl.ds(start, t_tile, stride=stride), :])
    slab = cols[0] if kernel == 1 else jnp.concatenate(cols, axis=-1)

    # --- single MXU matmul + bias epilogue -------------------------------------
    acc = jnp.dot(slab, w_ref[...], preferred_element_type=jnp.float32)
    acc = acc + b_ref[...]                            # (1, C_out) broadcast, once/tile
    o_ref[...] = acc[None, :, :].astype(o_ref.dtype)


# ------------------------------- wrapper --------------------------------------


def reborn_generator_forward(dense_x, tokens, dense_padding_mask, params, config,
                             *, t_tile=512):
    """Mirrors RebornGenerator.forward. dense_x: (B, T, C_in)."""
    B, T, C_in = dense_x.shape
    C_out = config["generator_output_dim"]
    K = config["generator_kernel"]
    S = config["generator_stride"]
    D = config["generator_dilation"]
    pad = K // 2

    # dropout: eval mode -> identity.
    T_out = (T + 2 * pad - D * (K - 1) - 1) // S + 1

    # time tiling: multiple of 8 sublanes, capped at the (rounded-up) output length
    tt = max(8, min(_round_up(t_tile, 8), _round_up(T_out, 8)))
    NT = pl.cdiv(T_out, tt)
    T_out_p = NT * tt                                 # padded output rows (sliced below)

    # VMEM scratch length: covers the furthest read of the last (padded) tile
    T_sc = max(pad + T, (T_out_p - 1) * S + (K - 1) * D + 1)
    T_sc = _round_up(T_sc, 8)

    # weight: torch (C_out, C_in, K) -> (K*C_in, C_out), tap-major contraction
    w = params["weight"]
    w_flat = jnp.transpose(w, (2, 1, 0)).reshape(K * C_in, C_out).astype(jnp.float32)
    if params.get("bias") is not None:
        b = params["bias"].reshape(1, C_out).astype(jnp.float32)
    else:
        b = jnp.zeros((1, C_out), jnp.float32)

    # explicit VMEM budget (double-buffered blocks + scratch), important on v7x (64 MiB)
    est_bytes = 4 * (2 * T * C_in + T_sc * C_in + 2 * K * C_in * C_out
                     + 2 * C_out + 2 * tt * C_out)
    vmem_limit = int(min(128 << 20, max(32 << 20, 2 * est_bytes)))

    conv = pl.pallas_call(
        functools.partial(_conv1d_kernel, kernel=K, stride=S, dilation=D,
                          pad=pad, t_in=T, t_tile=tt),
        out_shape=jax.ShapeDtypeStruct((B, T_out_p, C_out), jnp.float32),
        grid=(B, NT),
        in_specs=[
            pl.BlockSpec((1, T, C_in), lambda bi, ti: (bi, 0, 0)),
            pl.BlockSpec((K * C_in, C_out), lambda bi, ti: (0, 0)),
            pl.BlockSpec((1, C_out), lambda bi, ti: (0, 0)),
        ],
        out_specs=pl.BlockSpec((1, tt, C_out), lambda bi, ti: (bi, ti, 0)),
        scratch_shapes=[pltpu.VMEM((T_sc, C_in), jnp.float32)],
        compiler_params=pltpu.CompilerParams(
            # batch is megacore-parallel; time carries the VMEM halo scratch -> arbitrary
            dimension_semantics=("parallel", "arbitrary"),
            vmem_limit_bytes=vmem_limit,
        ),
    )
    dense_out = conv(dense_x.astype(jnp.float32), w_flat, b)
    if T_out_p != T_out:
        dense_out = dense_out[:, :T_out, :]
    dense_out = dense_out.astype(dense_x.dtype)

    # padding-mask bookkeeping (cheap indexing, kept in plain XLA glue)
    mask = dense_padding_mask
    if S > 1:
        mask = mask[:, ::S]
    if mask.shape[1] != T_out:
        diff = T_out - mask.shape[1]
        if diff > 0:
            mask = jnp.zeros((B, T_out), mask.dtype).at[:, diff:].set(mask)
        else:
            mask = mask[:, :diff]                     # truncate (diff < 0)

    # token_x: tiny one-hot -> plain XLA (no extra kernel launch worth it)
    token_x = None
    if tokens is not None:
        token_x = jax.nn.one_hot(tokens.astype(jnp.int32), C_out,
                                 dtype=dense_out.dtype)

    return {"dense_x": dense_out, "token_x": token_x, "dense_padding_mask": mask}


# ------------------------------- reference ------------------------------------


def _reference_conv(dense_x, w, b, S, D, pad):
    x_ncw = jnp.transpose(dense_x, (0, 2, 1))
    y = lax.conv_general_dilated(
        x_ncw, w, window_strides=(S,), padding=[(pad, pad)],
        rhs_dilation=(D,), dimension_numbers=("NCH", "OIH", "NCH"))
    y = jnp.transpose(y, (0, 2, 1))
    if b is not None:
        y = y + b[None, None, :]
    return y


# --------------------------------- main ----------------------------------------


if __name__ == "__main__":
    B, T = 2, 32
    C_in, C_out = 32, 32
    T_tok = 8

    key = jax.random.PRNGKey(0)

    cases = [
        # (kernel, stride, dilation, bias, t_tile)   -- all exercise the Pallas kernel
        dict(kernel=3, stride=1, dilation=1, bias=True, t_tile=8),    # diff == 0, 4 tiles
        dict(kernel=4, stride=1, dilation=1, bias=False, t_tile=8),   # T_out > T  (pad path)
        dict(kernel=5, stride=1, dilation=2, bias=True, t_tile=8),    # T_out < T  (truncate)
        dict(kernel=3, stride=1, dilation=1, bias=True, t_tile=512),  # single-tile path
    ]

    for ci, case in enumerate(cases):
        config = {
            "generator_input_dim": C_in,
            "generator_output_dim": C_out,
            "generator_kernel": case["kernel"],
            "generator_stride": case["stride"],
            "generator_dilation": case["dilation"],
            "generator_bias": case["bias"],
            "generator_dropout": 0.0,
        }
        K, S, D = case["kernel"], case["stride"], case["dilation"]
        pad = K // 2

        k_x, k_w, k_b, k_tok = jax.random.split(jax.random.fold_in(key, ci), 4)
        dense_x = jax.random.normal(k_x, (B, T, C_in), jnp.float32)
        tokens = jax.random.randint(k_tok, (B, T_tok), 0, C_out, dtype=jnp.int32)
        dense_padding_mask = jnp.zeros((B, T), jnp.bool_).at[:, T - 3:].set(True)

        fan_in = C_in * K
        bound = 1.0 / (fan_in ** 0.5)
        params = {
            "weight": jax.random.uniform(k_w, (C_out, C_in, K), jnp.float32,
                                         -bound, bound),
            "bias": (jax.random.uniform(k_b, (C_out,), jnp.float32, -bound, bound)
                     if case["bias"] else None),
        }

        out = reborn_generator_forward(dense_x, tokens, dense_padding_mask,
                                       params, config, t_tile=case["t_tile"])
        jax.block_until_ready(out["dense_x"])
        jax.block_until_ready(out["token_x"])
        jax.block_until_ready(out["dense_padding_mask"])

        # ---- correctness vs plain-JAX / manual references ----
        ref = _reference_conv(dense_x, params["weight"], params["bias"], S, D, pad)
        assert out["dense_x"].shape == ref.shape, (out["dense_x"].shape, ref.shape)
        err = float(jnp.max(jnp.abs(out["dense_x"] - ref)))
        assert err < 1e-4, f"case {ci}: conv mismatch {err}"

        N = tokens.size
        ref_tok = (jnp.zeros((N, C_out), jnp.float32)
                   .at[jnp.arange(N), tokens.reshape(-1)].set(1.0)
                   .reshape(tokens.shape + (C_out,)))
        assert jnp.array_equal(out["token_x"], ref_tok), f"case {ci}: token_x mismatch"

        exp_mask = dense_padding_mask
        if S > 1:
            exp_mask = exp_mask[:, ::S]
        d = ref.shape[1] - exp_mask.shape[1]
        if d > 0:
            exp_mask = jnp.zeros((B, ref.shape[1]), exp_mask.dtype).at[:, d:].set(exp_mask)
        elif d < 0:
            exp_mask = exp_mask[:, :d]
        assert out["dense_padding_mask"].shape == (B, ref.shape[1])
        assert jnp.array_equal(out["dense_padding_mask"], exp_mask), \
            f"case {ci}: mask mismatch"

    print("KERNEL_OK")
</pallas_src>

<mosaic_0001>
module attributes {stable_mosaic.version = 11 : i64} {
  func.func @_conv1d_kernel(%arg0: i32, %arg1: i32, %arg2: memref<1x32x32xf32, #tpu.memory_space<vmem>>, %arg3: memref<96x32xf32, #tpu.memory_space<vmem>>, %arg4: memref<1x32xf32, #tpu.memory_space<vmem>>, %arg5: memref<1x8x32xf32, #tpu.memory_space<vmem>>, %arg6: memref<40x32xf32, #tpu.memory_space<vmem>>) attributes {dimension_semantics = [#tpu.dimension_semantics<parallel>, #tpu.dimension_semantics<arbitrary>], iteration_bounds = array<i64: 2, 4>, scalar_prefetch = 0 : i64, scratch_operands = 1 : i64, tpu.core_type = #tpu.core_type<tc>, window_params = [{transform_indices = @transform_0, window_bounds = array<i64: 1, 32, 32>}, {pipeline_mode = #tpu.pipeline_mode<synchronous>, transform_indices = @transform_1, window_bounds = array<i64: 96, 32>}, {pipeline_mode = #tpu.pipeline_mode<synchronous>, transform_indices = @transform_2, window_bounds = array<i64: 1, 32>}, {transform_indices = @transform_3, window_bounds = array<i64: 1, 8, 32>}]} {
    %c0_i32 = arith.constant 0 : i32
    %0 = arith.cmpi eq, %arg1, %c0_i32 : i32
    %1 = arith.extui %0 : i1 to i32
    %c0_i32_0 = arith.constant 0 : i32
    %2 = arith.cmpi ne, %1, %c0_i32_0 : i32
    scf.if %2 {
      %cst_11 = arith.constant 0.000000e+00 : f32
      %22 = vector.broadcast %cst_11 : f32 to vector<1x32xf32>
      %c0_12 = arith.constant 0 : index
      %c0_13 = arith.constant 0 : index
      %23 = vector.load %arg6[%c0_12, %c0_13] : memref<40x32xf32, #tpu.memory_space<vmem>>, vector<1x32xf32>
      tpu.vector_store %arg6[%c0_12, %c0_13], %22 {strides = array<i32>} : memref<40x32xf32, #tpu.memory_space<vmem>>, vector<1x32xf32>,
      %cst_14 = arith.constant 0.000000e+00 : f32
      %24 = vector.broadcast %cst_14 : f32 to vector<7x32xf32>
      %c33 = arith.constant 33 : index
      %c0_15 = arith.constant 0 : index
      %25 = vector.load %arg6[%c33, %c0_15] : memref<40x32xf32, #tpu.memory_space<vmem>>, vector<7x32xf32>
      tpu.vector_store %arg6[%c33, %c0_15], %24 {strides = array<i32>} : memref<40x32xf32, #tpu.memory_space<vmem>>, vector<7x32xf32>,
      %c0_16 = arith.constant 0 : index
      %c0_17 = arith.constant 0 : index
      %c0_18 = arith.constant 0 : index
      %26 = vector.load %arg2[%c0_16, %c0_17, %c0_18] : memref<1x32x32xf32, #tpu.memory_space<vmem>>, vector<1x32x32xf32>
      %27 = vector.shape_cast %26 : vector<1x32x32xf32> to vector<32x32xf32>
      %c1 = arith.constant 1 : index
      %c0_19 = arith.constant 0 : index
      %28 = vector.load %arg6[%c1, %c0_19] : memref<40x32xf32, #tpu.memory_space<vmem>>, vector<32x32xf32>
      tpu.vector_store %arg6[%c1, %c0_19], %27 {strides = array<i32>} : memref<40x32xf32, #tpu.memory_space<vmem>>, vector<32x32xf32>,
    } else {
    }
    %c8_i32 = arith.constant 8 : i32
    %3 = arith.muli %arg1, %c8_i32 : i32
    %4 = tpu.assume_multiple %3, 8 : i32
    %c0_i32_1 = arith.constant 0 : i32
    %5 = arith.addi %4, %c0_i32_1 : i32
    %6 = arith.index_cast %5 : i32 to index
    %c0 = arith.constant 0 : index
    %7 = vector.load %arg6[%6, %c0] : memref<40x32xf32, #tpu.memory_space<vmem>>, vector<8x32xf32>
    %c1_i32 = arith.constant 1 : i32
    %8 = arith.addi %4, %c1_i32 : i32
    %9 = arith.index_cast %8 : i32 to index
    %c0_2 = arith.constant 0 : index
    %10 = vector.load %arg6[%9, %c0_2] : memref<40x32xf32, #tpu.memory_space<vmem>>, vector<8x32xf32>
    %c2_i32 = arith.constant 2 : i32
    %11 = arith.addi %4, %c2_i32 : i32
    %12 = arith.index_cast %11 : i32 to index
    %c0_3 = arith.constant 0 : index
    %13 = vector.load %arg6[%12, %c0_3] : memref<40x32xf32, #tpu.memory_space<vmem>>, vector<8x32xf32>
    %14 = tpu.concatenate %7, %10, %13 in 1 : vector<8x32xf32>, vector<8x32xf32>, vector<8x32xf32> -> vector<8x96xf32>
    %c0_4 = arith.constant 0 : index
    %c0_5 = arith.constant 0 : index
    %15 = vector.load %arg3[%c0_4, %c0_5] : memref<96x32xf32, #tpu.memory_space<vmem>>, vector<96x32xf32>
    %cst = arith.constant dense<0.000000e+00> : vector<8x32xf32>
    %16 = tpu.matmul %14, %15, %cst {dimension_numbers = #tpu.dot_dimension_numbers<[1], [0], [0], [1], [0, 0, 1, 1], [], []>} : vector<8x96xf32>, vector<96x32xf32>, vector<8x32xf32> -> vector<8x32xf32>
    %c0_6 = arith.constant 0 : index
    %c0_7 = arith.constant 0 : index
    %17 = vector.load %arg4[%c0_6, %c0_7] : memref<1x32xf32, #tpu.memory_space<vmem>>, vector<1x32xf32>
    %18 = vector.broadcast %17 : vector<1x32xf32> to vector<8x32xf32>
    %19 = arith.addf %16, %18 : vector<8x32xf32>
    %20 = vector.shape_cast %19 : vector<8x32xf32> to vector<1x8x32xf32>
    %c0_8 = arith.constant 0 : index
    %c0_9 = arith.constant 0 : index
    %c0_10 = arith.constant 0 : index
    %21 = vector.load %arg5[%c0_8, %c0_9, %c0_10] : memref<1x8x32xf32, #tpu.memory_space<vmem>>, vector<1x8x32xf32>
    tpu.vector_store %arg5[%c0_8, %c0_9, %c0_10], %20 {strides = array<i32>} : memref<1x8x32xf32, #tpu.memory_space<vmem>>, vector<1x8x32xf32>,
    return
  }
  func.func @transform_0(%arg0: i32, %arg1: i32) -> (i32, i32, i32) {
    %c0_i32 = arith.constant 0 : i32
    %c0_i32_0 = arith.constant 0 : i32
    %c0_i32_1 = arith.constant 0 : i32
    return %arg0, %c0_i32, %c0_i32_0 : i32, i32, i32
  }
  func.func @transform_1(%arg0: i32, %arg1: i32) -> (i32, i32) {
    %c0_i32 = arith.constant 0 : i32
    %c0_i32_0 = arith.constant 0 : i32
    %c0_i32_1 = arith.constant 0 : i32
    return %c0_i32, %c0_i32_0 : i32, i32
  }
  func.func @transform_2(%arg0: i32, %arg1: i32) -> (i32, i32) {
    %c0_i32 = arith.constant 0 : i32
    %c0_i32_0 = arith.constant 0 : i32
    %c0_i32_1 = arith.constant 0 : i32
    return %c0_i32, %c0_i32_0 : i32, i32
  }
  func.func @transform_3(%arg0: i32, %arg1: i32) -> (i32, i32, i32) {
    %c0_i32 = arith.constant 0 : i32
    %c0_i32_0 = arith.constant 0 : i32
    return %arg0, %arg1, %c0_i32 : i32, i32, i32
  }
}

</mosaic_0001>

<llo_original>
// kernel: tpu_custom_call.1
$region0: #{tpu_custom_call.1}
  #allocation0 [shape = 'u32[]', space=smem, size = 0x4, offset = 0x4, fixed_abs, tag = 'smem constant byte address 0x4 - core index']
  #allocation1 [shape = 'u32[144,128]{1,0:T(1,128)}', space=vmem, size = 0x12000, scoped, tag = 'internal scratch']
  #allocation2 [shape = 'f32[40,32]{1,0:T(8,128)}', space=vmem, size = 0x5000, scoped, tag = 'scratch operand']
  %s0 = inlined_call_operand.vmem [shape: f32[2,32,32], index: 0, kind: input, shape index: {}]
  %s1 = inlined_call_operand.vmem [shape: f32[96,32], index: 1, kind: input, shape index: {}]
  %s2 = inlined_call_operand.vmem [shape: f32[1,32], index: 2, kind: input, shape index: {}]
  %s3 = inlined_call_operand.hbm [shape: f32[2,32,32], index: 3, kind: output, shape index: {}]
  %s4 = sld [smem:[#allocation0]]
  $region49: #{tpu_custom_call.1} parent=0
    _
  %s6 = ssub.s32 1, %s4
  %s7 = scalar_select 0, %s6, %s4
  $region1: #{tpu_custom_call.1} parent=0
    #allocation3 [shape = 'u8[8192]{0}', space=vmem, size = 0x2000, scoped, tag = 'output window, operand 0']
    #allocation4 [shape = 's32[2]{0}', space=sflag, size = 0x8, scoped, tag = 'scoped memory for tpu_custom_call.1']
    %8 = vsyncpa [#allocation4], 0
    %s9 = scalar_lea.sflag [#allocation4], 1
    %10 = vsyncpa %s9, 0
    loop: start=0, step=1, limit=10
    $region2: #{tpu_custom_call.1} parent=1 // loop_pre_header
      _
    $region3: #{tpu_custom_call.1} parent=1 // loop_header
      %s12 = sphi 0, %s16
      %p13 = scmp.ge.s32.totalorder %s12, 10
      %s19 = sphi 0, %s31
      %s20 = sphi 0, %s27
      %s21 = sphi 0, %s19
      %s22 = sphi 0, %s20
      %s23 = sphi 0, %s21
      %s24 = sphi 0, %s22
      %s34 = sphi 0, %s36
      %s37 = sphi 0, %s34
      %s38 = sphi 0, %s37
      %s54 = sphi 0, %s38
      %s58 = sphi 0, %s58
      %s60 = sphi 0, %s58
      %s61 = sphi 0, %s60
      %s75 = sphi 0, %s61
      %s79 = sphi 0, %s79
      %s81 = sphi 0, %s79
      %s82 = sphi 0, %s81
      %s96 = sphi 0, %s82
      %s104 = sphi 0, %s106
      %s107 = sphi 0, %s104
      %s108 = sphi 0, %s107
      %s124 = sphi 0, %s108
    $region4: #{tpu_custom_call.1} parent=1 // loop_header_branch
      %15 = sbr.rel (%p13) target = $region8
    $region5: #{tpu_custom_call.1} parent=1 // loop_body
      %s17 = ssub.s32 %s12, 1
      %s18 = ssub.s32 %s12, 2
      %s25 = sadd.s32 1, %s20
      %p26 = scmp.ge.s32.totalorder %s25, 4
      %s27 = scalar_select %p26, 0, %s25
      %s28 = sadd.s32 1, %s19
      %s29 = scalar_select %p26, %s28, %s19
      %p30 = scmp.ge.s32.totalorder %s29, 2
      %s31 = scalar_select %p30, 0, %s29
      %s32 = ssub.s32 %s19, %s31
      %p33 = scmp.eq.s32.totalorder %s32, 0
      %s35 = sadd.s32 %s34, 1
      %s36 = scalar_select %p33, %s34, %s35
      %p39 = pneg %p33
      %p40 = scmp.eq.s32.totalorder %s12, 7
      %p41 = por %p39, %p40
      %p42 = scmp.ne.s32.totalorder %s34, %s37
      %p43 = scmp.eq.s32.totalorder %s12, 0
      %p44 = por %p42, %p43
      %p45 = scmp.ne.s32.totalorder %s34, %s37
      %p46 = scmp.eq.s32.totalorder %s17, 7
      %p47 = por %p45, %p46
      %p48 = scmp.ne.s32.totalorder %s37, %s38
      %p49 = scmp.eq.s32.totalorder %s17, 0
      %p50 = por %p48, %p49
      %p51 = scmp.ne.s32.totalorder %s37, %s38
      %p52 = scmp.eq.s32.totalorder %s18, 7
      %p53 = por %p51, %p52
      %p55 = scmp.ne.s32.totalorder %s38, %s54
      %p56 = scmp.eq.s32.totalorder %s18, 0
      %p57 = por %p55, %p56
      %s59 = sadd.s32 %s58, 1
      %p62 = scmp.eq.s32.totalorder %s12, 7
      %p63 = scmp.ne.s32.totalorder %s58, %s60
      %p64 = scmp.eq.s32.totalorder %s12, 0
      %p65 = por %p63, %p64
      %p66 = scmp.ne.s32.totalorder %s58, %s60
      %p67 = scmp.eq.s32.totalorder %s17, 7
      %p68 = por %p66, %p67
      %p69 = scmp.ne.s32.totalorder %s60, %s61
      %p70 = scmp.eq.s32.totalorder %s17, 0
      %p71 = por %p69, %p70
      %p72 = scmp.ne.s32.totalorder %s60, %s61
      %p73 = scmp.eq.s32.totalorder %s18, 7
      %p74 = por %p72, %p73
      %p76 = scmp.ne.s32.totalorder %s61, %s75
      %p77 = scmp.eq.s32.totalorder %s18, 0
      %p78 = por %p76, %p77
      %s80 = sadd.s32 %s79, 1
      %p83 = scmp.eq.s32.totalorder %s12, 7
      %p84 = scmp.ne.s32.totalorder %s79, %s81
      %p85 = scmp.eq.s32.totalorder %s12, 0
      %p86 = por %p84, %p85
      %p87 = scmp.ne.s32.totalorder %s79, %s81
      %p88 = scmp.eq.s32.totalorder %s17, 7
      %p89 = por %p87, %p88
      %p90 = scmp.ne.s32.totalorder %s81, %s82
      %p91 = scmp.eq.s32.totalorder %s17, 0
      %p92 = por %p90, %p91
      %p93 = scmp.ne.s32.totalorder %s81, %s82
      %p94 = scmp.eq.s32.totalorder %s18, 7
      %p95 = por %p93, %p94
      %p97 = scmp.ne.s32.totalorder %s82, %s96
      %p98 = scmp.eq.s32.totalorder %s18, 0
      %p99 = por %p97, %p98
      %s100 = ssub.s32 %s19, %s31
      %s101 = ssub.s32 %s20, %s27
      %s102 = sor.u32 %s100, %s101
      %p103 = scmp.eq.s32.totalorder %s102, 0
      %s105 = sadd.s32 %s104, 1
      %s106 = scalar_select %p103, %s104, %s105
      %p109 = pneg %p103
      %p110 = scmp.eq.s32.totalorder %s12, 7
      %p111 = por %p109, %p110
      %p112 = scmp.ne.s32.totalorder %s104, %s107
      %p113 = scmp.eq.s32.totalorder %s12, 0
      %p114 = por %p112, %p113
      %p115 = scmp.ne.s32.totalorder %s104, %s107
      %p116 = scmp.eq.s32.totalorder %s17, 7
      %p117 = por %p115, %p116
      %p118 = scmp.ne.s32.totalorder %s107, %s108
      %p119 = scmp.eq.s32.totalorder %s17, 0
      %p120 = por %p118, %p119
      %p121 = scmp.ne.s32.totalorder %s107, %s108
      %p122 = scmp.eq.s32.totalorder %s18, 7
      %p123 = por %p121, %p122
      %p125 = scmp.ne.s32.totalorder %s108, %s124
      %p126 = scmp.eq.s32.totalorder %s18, 0
      %p127 = por %p125, %p126
      %p128 = scmp.le.s32.totalorder 1, %s12
      %p129 = scmp.lt.s32.totalorder %s12, 9
      %p130 = pnand %p128, %p129
      %p131 = pneg %p130
      // Predicated region
      $region9: #{tpu_custom_call.1} parent=5 // pred_check
        _
      $region10: #{tpu_custom_call.1} parent=5 // pred_check_branch
        %133 = sbr.rel (%p130) target = $region12
      $region11: #{tpu_custom_call.1} parent=5 // pred_region
        %s134 = ssub.s32 %s12, 1
        // Predicated region
        $region13: #{tpu_custom_call.1} parent=11 // pred_check
          %p135 = pneg %p71
        $region14: #{tpu_custom_call.1} parent=11 // pred_check_branch
          %137 = sbr.rel (%p135) target = $region16
        $region15: #{tpu_custom_call.1} parent=11 // pred_region
          _
        $region16: #{tpu_custom_call.1} parent=11 // pred_fallthru
          _
        // Predicated region
        $region17: #{tpu_custom_call.1} parent=11 // pred_check
          %p138 = pneg %p92
        $region18: #{tpu_custom_call.1} parent=11 // pred_check_branch
          %140 = sbr.rel (%p138) target = $region20
        $region19: #{tpu_custom_call.1} parent=11 // pred_region
          _
        $region20: #{tpu_custom_call.1} parent=11 // pred_fallthru
          _
      $region12: #{tpu_custom_call.1} parent=5 // pred_fallthru
        _
      %p141 = scmp.lt.s32.totalorder %s12, 8
      // Predicated region
      $region21: #{tpu_custom_call.1} parent=5 // pred_check
        %p142 = pneg %p141
      $region22: #{tpu_custom_call.1} parent=5 // pred_check_branch
        %144 = sbr.rel (%p142) target = $region24
      $region23: #{tpu_custom_call.1} parent=5 // pred_region
        // Predicated region
        $region25: #{tpu_custom_call.1} parent=23 // pred_check
          %p145 = pneg %p44
        $region26: #{tpu_custom_call.1} parent=23 // pred_check_branch
          %147 = sbr.rel (%p145) target = $region28
        $region27: #{tpu_custom_call.1} parent=23 // pred_region
          %p148 = scmp.lt.s32.totalorder %s19, 1
          %s149 = scalar_select %p148, %s19, 1
          %s150 = smul.addr %s149, 4
          %s151 = smul.addr %s150, 8
          %s152 = scalar_lea.vmem %s0, %s151
        $region28: #{tpu_custom_call.1} parent=23 // pred_fallthru
          _
      $region24: #{tpu_custom_call.1} parent=5 // pred_fallthru
        _
      %p153 = scmp.le.s32.totalorder 1, %s12
      %p154 = scmp.lt.s32.totalorder %s12, 9
      %p155 = pnand %p153, %p154
      %p156 = pneg %p155
      // Predicated region
      $region29: #{tpu_custom_call.1} parent=5 // pred_check
        _
      $region30: #{tpu_custom_call.1} parent=5 // pred_check_branch
        %158 = sbr.rel (%p155) target = $region32
      $region31: #{tpu_custom_call.1} parent=5 // pred_region
        %s159 = ssub.s32 %s12, 1
        %p160 = scmp.lt.s32.totalorder %s21, 1
        %s161 = scalar_select %p160, %s21, 1
        %s162 = smul.addr %s161, 4
        %s163 = smul.addr %s162, 8
        %s164 = scalar_lea.vmem %s0, %s163
        %p165 = pneg %p50
        %p166 = pneg %p47
        %p167 = pneg %p71
        %p168 = pneg %p68
        %p169 = pneg %p92
        %p170 = pneg %p89
        %p171 = pneg %p120
        %p172 = pneg %p117
        %s173 = sand.u32 %s107, 1
        %s174 = scalar_lea.sflag [#allocation4], %s173
        %s175 = sand.u32 %s107, 1
        %s176 = smul.addr %s175, 8
        %s177 = scalar_lea.vmem [#allocation3], %s176
        %p178 = scmp.lt.s32.totalorder %s21, 1
        %s179 = scalar_select %p178, %s21, 1
        %s180 = smul.addr %s179, 4
        %s181 = smul.addr %s180, 8
        %s182 = scalar_lea.vmem %s0, %s181
        %p183 = scmp.eq.s32.totalorder %s22, 0
        // Predicated region
        $region33: #{tpu_custom_call.1} parent=31 // pred_check
          %p184 = pneg %p183
        $region34: #{tpu_custom_call.1} parent=31 // pred_check_branch
          %186 = sbr.rel (%p184) target = $region36
        $region35: #{tpu_custom_call.1} parent=31 // pred_region
          %vm187 = vcmask 253952
          %188 = vst.msk [vmem:[#allocation2] sm:$0x1] %vm187, 0.0
          %vm189 = vcmask 260096
          %190 = vst.msk [vmem:[#allocation2 + $0x21] sm:$0x7f] %vm189, 0.0
          %v191 = vld [vmem:[%s182] sm:$0xff]
          %v192 = vld [vmem:[%s182 + $0x8] sm:$0xff]
          %v193 = vld [vmem:[%s182 + $0x10] sm:$0xff]
          %v194 = vld [vmem:[%s182 + $0x18] sm:$0xff]
          %vm195 = vcmask 261120
          %196 = vst.msk [vmem:[#allocation2 + $0x1] sm:$0xff] %vm195, %v191
          %197 = vst.msk [vmem:[#allocation2 + $0x9] sm:$0xff] %vm195, %v192
          %198 = vst.msk [vmem:[#allocation2 + $0x11] sm:$0xff] %vm195, %v193
          %199 = vst.msk [vmem:[#allocation2 + $0x19] sm:$0xff] %vm195, %v194
        $region36: #{tpu_custom_call.1} parent=31 // pred_fallthru
          _
        %s200 = smul.u32 %s22, 8
        %s201 = scalar_lea.vmem [#allocation2], %s200
        %v202 = vld [vmem:[%s201] sm:$0xff]
        %s203 = sadd.s32 %s200, 1
        %s204 = scalar_lea.vmem [#allocation2], %s203
        %v205 = vld [vmem:[%s204] sm:$0xff]
        %s206 = sadd.s32 %s200, 2
        %s207 = scalar_lea.vmem [#allocation2], %s206
        %v208 = vld [vmem:[%s207] sm:$0xff]
        %210 = vrot.lane.b32.xlu0 %v205, 32
        %v211 = vpop.permute.xlu0 %210
        %214 = vrot.lane.b32.xlu0 %v208, 64
        %v215 = vpop.permute.xlu0 %214
        %vm217 = vcmask 261120
        %v218 = vsel %vm217, %v202, %v211
        %vm219 = vcmask 523264
        %v220 = vsel %vm219, %v218, %v215
        %v221 = vld [vmem:[%s1] sm:$0xff]
        %v222 = vld [vmem:[%s1 + $0x8] sm:$0xff]
        %v223 = vld [vmem:[%s1 + $0x10] sm:$0xff]
        %v224 = vld [vmem:[%s1 + $0x18] sm:$0xff]
        %v225 = vld [vmem:[%s1 + $0x20] sm:$0xff]
        %v226 = vld [vmem:[%s1 + $0x28] sm:$0xff]
        %v227 = vld [vmem:[%s1 + $0x30] sm:$0xff]
        %v228 = vld [vmem:[%s1 + $0x38] sm:$0xff]
        %v229 = vld [vmem:[%s1 + $0x40] sm:$0xff]
        %v230 = vld [vmem:[%s1 + $0x48] sm:$0xff]
        %v231 = vld [vmem:[%s1 + $0x50] sm:$0xff]
        %v232 = vld [vmem:[%s1 + $0x58] sm:$0xff]
        %v233 = vld [vmem:[%s2] sm:$0x1]
        %v235 = vlaneseq
        %v236 = vshrl.u32 %v235, 7
        %v237 = vsub.s32 0, %v236
        %v238 = vrot.slane %v233, %v237
        %vm240 = vcmask 785408
        %v242 = vsel %vm240, %v220, 0
        %244 = vmatprep.subr.mxu0 0.0
        %245 = vmatpush1.msra.mxu0 %v221
        %246 = vmatprep.subr.mxu0 0.0
        %247 = vmatpush1.msra.mxu0 %v222
        %248 = vmatprep.subr.mxu0 0.0
        %249 = vmatpush1.msra.mxu0 %v223
        %250 = vmatprep.subr.mxu0 0.0
        %251 = vmatpush1.msra.mxu0 %v224
        %252 = vmatprep.subr.mxu0 0.0
        %253 = vmatpush1.msra.mxu0 %v225
        %254 = vmatprep.subr.mxu0 0.0
        %255 = vmatpush1.msra.mxu0 %v226
        %256 = vmatprep.subr.mxu0 0.0
        %257 = vmatpush1.msra.mxu0 %v227
        %258 = vmatprep.subr.mxu0 0.0
        %259 = vmatpush1.msra.mxu0 %v228
        %260 = vmatprep.subr.mxu0 0.0
        %261 = vmatpush1.msra.mxu0 %v229
        %262 = vmatprep.subr.mxu0 0.0
        %263 = vmatpush1.msra.mxu0 %v230
        %264 = vmatprep.subr.mxu0 0.0
        %265 = vmatpush1.msra.mxu0 %v231
        %266 = vmatprep.subr.mxu0 0.0
        %267 = vmatpush1.msra.mxu0 %v232
        %268 = vmatprep.subr.mxu0 0.0
        %269 = vmatpush1.msra.mxu0 0.0
        %270 = vmatprep.subr.mxu0 0.0
        %271 = vmatpush1.msra.mxu0 0.0
        %272 = vmatprep.subr.mxu0 0.0
        %273 = vmatpush1.msra.mxu0 0.0
        %274 = vmatprep.subr.mxu0 0.0
        %275 = vmatpush1.msra.mxu0 0.0
        %276 = vmatprep.subr.mxu0 0.0
        %277 = vmatpush1.msra.mxu0 0.0
        %278 = vmatprep.subr.mxu0 0.0
        %279 = vmatpush1.msra.mxu0 0.0
        %280 = vmatprep.subr.mxu0 0.0
        %281 = vmatpush1.msra.mxu0 0.0
        %282 = vmatprep.subr.mxu0 0.0
        %283 = vmatpush1.msra.mxu0 0.0
        %284 = vmatprep.subr.mxu0 0.0
        %285 = vmatpush1.msra.mxu0 0.0
        %286 = vmatprep.subr.mxu0 0.0
        %287 = vmatpush1.msra.mxu0 0.0
        %288 = vmatprep.subr.mxu0 0.0
        %289 = vmatpush1.msra.mxu0 0.0
        %290 = vmatprep.subr.mxu0 0.0
        %291 = vmatpush1.msra.mxu0 0.0
        %292 = vmatprep.subr.mxu0 0.0
        %293 = vmatpush1.msra.mxu0 0.0
        %294 = vmatprep.subr.mxu0 0.0
        %295 = vmatpush1.msra.mxu0 0.0
        %296 = vmatprep.subr.mxu0 0.0
        %297 = vmatpush1.msra.mxu0 0.0
        %298 = vmatprep.subr.mxu0 0.0
        %299 = vmatpush1.msra.mxu0 0.0
        %300 = vmatprep.subr.mxu0 0.0
        %301 = vmatpush1.msra.mxu0 0.0
        %302 = vmatprep.subr.mxu0 0.0
        %303 = vmatpush1.msra.mxu0 0.0
        %304 = vmatprep.subr.mxu0 0.0
        %305 = vmatpush1.msra.mxu0 0.0
        %306 = vmatprep.subr.mxu0 0.0
        %307 = vmatpush1.msra.mxu0 0.0
        %308 = vmatprep.mubr.f32.mxu0 0.0
        %309 = vmatmul.mubr.f32.gmra.mrb[0].mxu0 %v242
        %v310 = vpop.f32.mrb[0].mxu0
        %v311 = vadd.f32 %v238, %v310
        %v312 = vpop.f32.mrb[0].mxu0
        %313 = vdwg.mxu0
        %314 = vst.msk [vmem:[%s177] sm:$0xff] %vm217, %v311
        %s315 = sand.u32 %s107, 1
        %s316 = scalar_lea.sflag [#allocation4], %s315
        %s317 = sand.u32 %s107, 1
        %s318 = smul.addr %s317, 8
        %s319 = scalar_lea.vmem [#allocation3], %s318
        // Predicated region
        $region37: #{tpu_custom_call.1} parent=31 // pred_check
          %p320 = pneg %p117
        $region38: #{tpu_custom_call.1} parent=31 // pred_check_branch
          %322 = sbr.rel (%p320) target = $region40
        $region39: #{tpu_custom_call.1} parent=31 // pred_region
          %s324 = ssub.s32 128, 128
          %325 = vsyncadd %s316, %s324
          %s326 = smul.addr %s21, 4
          %s327 = sadd.s32 %s22, %s326
          %s328 = smul.addr %s327, 128
          %s329 = scalar_lea.hbm %s3, %s328
          %s331 = sshll.u32 %s319, 4
          %s332 = int_to_ptr.vmem [resolvable:$true] %s331
          %334 = dma.vmem_to_hbm [thread:$0]  %s332, 128, %s329, %s316
        $region40: #{tpu_custom_call.1} parent=31 // pred_fallthru
          _
      $region32: #{tpu_custom_call.1} parent=5 // pred_fallthru
        _
      %p335 = scmp.le.s32.totalorder 2, %s12
      // Predicated region
      $region41: #{tpu_custom_call.1} parent=5 // pred_check
        %p336 = pneg %p335
      $region42: #{tpu_custom_call.1} parent=5 // pred_check_branch
        %338 = sbr.rel (%p336) target = $region44
      $region43: #{tpu_custom_call.1} parent=5 // pred_region
        %s339 = ssub.s32 %s12, 2
        // Predicated region
        $region45: #{tpu_custom_call.1} parent=43 // pred_check
          %p340 = pneg %p123
        $region46: #{tpu_custom_call.1} parent=43 // pred_check_branch
          %342 = sbr.rel (%p340) target = $region48
        $region47: #{tpu_custom_call.1} parent=43 // pred_region
          %s343 = sand.u32 %s108, 1
          %s344 = scalar_lea.sflag [#allocation4], %s343
          %s345 = sand.u32 %s108, 1
          %s346 = smul.addr %s345, 8
          %s347 = scalar_lea.vmem [#allocation3], %s346
          %348 = dma.done %s344, 128
        $region48: #{tpu_custom_call.1} parent=43 // pred_fallthru
          _
      $region44: #{tpu_custom_call.1} parent=5 // pred_fallthru
        _
    $region6: #{tpu_custom_call.1} parent=1 // loop_footer
      %s16 = sadd.s32 1, %s12
    $region7: #{tpu_custom_call.1} parent=1 // loop_footer_branch
      %11 = sbr.rel target = $region3
    $region8: #{tpu_custom_call.1} parent=1 // loop_exit
      _
    %349 = vsyncpa [#allocation4], 1
    %s350 = scalar_lea.sflag [#allocation4], 1
    %351 = vsyncpa %s350, 1

</llo_original>
